<compile_context>
chip_gen: v5e
topology: v5e:2x2
jax: 0.10.0
libtpu: 0.0.40
codegen_flags: <defaults>
</compile_context>

<pallas_src>
import math
import functools

import jax
import jax.numpy as jnp
from jax.experimental import pallas as pl
from jax.experimental.pallas import tpu as pltpu


def _glimpse_kernel(q_ref, r_ref,
                    wq_ref, bq_ref, wk_ref, bk_ref, wv_ref, bv_ref,
                    mask_ref, o_ref,
                    qp_ref, kp_ref, vp_ref, *, sub_b):
    # Per-grid-step blocks:
    #   q_ref : (TB, Lq, H) bf16      r_ref : (TB, Lk, H) bf16
    #   wq/wk/wv : (H, H) bf16 (pre-transposed; wq also pre-scaled by 1/sqrt(H))
    #   bq/bk/bv : (1, H) f32  (bq pre-scaled)
    #   mask_ref : (sub_b*Lq, sub_b*Lk) f32 additive block-diagonal mask
    #   o_ref : (TB, Lq, H) f32
    #   qp/kp/vp : VMEM scratch for projected Q/K/V (bf16)
    TB, Lq, H = q_ref.shape
    _, Lk, _ = r_ref.shape

    # Flatten batch into rows (leading-dim collapse, layout-safe) so each
    # projection is ONE MXU matmul over TB*L rows; stage results in VMEM.
    q2 = q_ref[...].reshape(TB * Lq, H)
    r2 = r_ref[...].reshape(TB * Lk, H)

    qp_ref[...] = (jnp.dot(q2, wq_ref[...], preferred_element_type=jnp.float32)
                   + bq_ref[...]).astype(jnp.bfloat16)
    kp_ref[...] = (jnp.dot(r2, wk_ref[...], preferred_element_type=jnp.float32)
                   + bk_ref[...]).astype(jnp.bfloat16)
    vp_ref[...] = (jnp.dot(r2, wv_ref[...], preferred_element_type=jnp.float32)
                   + bv_ref[...]).astype(jnp.bfloat16)

    # Fused block-diagonal attention over sub-chunks of sub_b batches each.
    # n_chunks is small and static -> plain Python (fully unrolled) loop.
    n_chunks = TB // sub_b
    rows_q = sub_b * Lq
    rows_k = sub_b * Lk
    for c in range(n_chunks):
        qc = qp_ref[c * rows_q:(c + 1) * rows_q, :]          # (sub_b*Lq, H) bf16
        kc = kp_ref[c * rows_k:(c + 1) * rows_k, :]          # (sub_b*Lk, H) bf16
        vc = vp_ref[c * rows_k:(c + 1) * rows_k, :]          # (sub_b*Lk, H) bf16

        # One fused QK^T matmul per chunk (scale already folded into Q).
        s = jnp.einsum('qh,kh->qk', qc, kc,
                       preferred_element_type=jnp.float32)    # (rows_q, rows_k)
        s = s + mask_ref[...]                                  # kill cross-batch

        # Numerically stable softmax in f32; exp + approx reciprocal ride the EUP.
        m = jnp.max(s, axis=-1, keepdims=True)
        e = jnp.exp(s - m)
        attn = e * pl.reciprocal(jnp.sum(e, axis=-1, keepdims=True), approx=True)

        # One fused attn @ V matmul per chunk, bf16 operands / f32 accumulation.
        oc = jnp.dot(attn.astype(jnp.bfloat16), vc,
                     preferred_element_type=jnp.float32)       # (rows_q, H)

        # Leading-dim split (tile-aligned: Lq rows per batch) + store.
        o_ref[c * sub_b:(c + 1) * sub_b] = (
            oc.reshape(sub_b, Lq, H).astype(o_ref.dtype))


def _choose_blocks(B, Lq, Lk, *, score_rows=128, target_rows=1024):
    """Pick (block_b, sub_b): batches per grid step / per attention sub-chunk."""
    # Attention sub-chunk: keep the fused (sub_b*Lq, sub_b*Lk) f32 score tile
    # around 128x128 so it stays comfortably in vregs.
    sub_b = max(1, score_rows // max(Lq, Lk))
    # Grid step: enough sub-chunks to cover ~target_rows query rows so the
    # projection matmuls fill the MXU and per-step overhead amortizes.
    chunks = max(1, target_rows // max(1, sub_b * Lq))
    block_b = sub_b * chunks
    # v7x has 2 TensorCores: keep >= 2 grid steps on the "parallel" batch axis.
    if B >= 2:
        block_b = min(block_b, (B + 1) // 2)
    block_b = max(1, min(block_b, B))
    sub_b = min(sub_b, block_b)
    block_b -= block_b % sub_b            # block_b is a multiple of sub_b
    return block_b, sub_b


def _vmem_limit_bytes(block_b, Lq, Lk, H, sub_b):
    """Scoped-VMEM budget derived from the chosen block sizes (review item)."""
    bf16, f32 = 2, 4
    # double-buffered pipelined grid blocks (query / ref / output)
    io = 2 * (block_b * Lq * H * bf16 + block_b * Lk * H * bf16
              + block_b * Lq * H * f32)
    # resident weights / biases / mask (constant index map, default 2 buffers)
    const = 2 * (3 * (H * H * bf16 + H * f32)
                 + (sub_b * Lq) * (sub_b * Lk) * f32)
    # projection scratch + per-chunk score/softmax intermediates
    scratch = block_b * (Lq + 2 * Lk) * H * bf16
    interm = 4 * (sub_b * Lq) * (sub_b * Lk) * f32 + block_b * Lq * H * f32
    need = io + const + scratch + interm
    # generous headroom, capped below v7x's 64 MiB physical VMEM per core
    return int(min(max(4 * need, 32 * 1024 * 1024), 56 * 1024 * 1024))


def glimpse_forward(query, ref, params, *, block_b=None, sub_b=None):
    """query: (B, Lq, H) f32, ref: (B, Lk, H) f32. Returns (B, Lq, H) f32."""
    B, Lq, H = query.shape
    Br, Lk, Hr = ref.shape
    assert Br == B and Hr == H
    wq, bq, wk, bk, wv, bv = params
    norm_fact = 1.0 / math.sqrt(H)

    if block_b is None or sub_b is None:
        block_b, sub_b = _choose_blocks(B, Lq, Lk)
    grid_b = pl.cdiv(B, block_b)
    Bp = grid_b * block_b

    # Host-side prep (outside the grid loop):
    #   * bf16 MXU operands (f32 accumulation in-kernel)
    #   * zero-pad the batch so any B works (cdiv grid, padded rows sliced off)
    q_bf = query.astype(jnp.bfloat16)
    r_bf = ref.astype(jnp.bfloat16)
    if Bp != B:
        pad = Bp - B
        q_bf = jnp.pad(q_bf, ((0, pad), (0, 0), (0, 0)))
        r_bf = jnp.pad(r_bf, ((0, pad), (0, 0), (0, 0)))

    #   * pre-transpose nn.Linear weights; fold 1/sqrt(H) into the Q projection
    wqT = (wq.T * norm_fact).astype(jnp.bfloat16)
    wkT = wk.T.astype(jnp.bfloat16)
    wvT = wv.T.astype(jnp.bfloat16)
    bq2 = (bq * norm_fact).reshape(1, H).astype(jnp.float32)
    bk2 = bk.reshape(1, H).astype(jnp.float32)
    bv2 = bv.reshape(1, H).astype(jnp.float32)

    #   * additive block-diagonal mask for the fused per-sub-chunk attention:
    #     0 inside a batch's own (Lq, Lk) block, -1e9 across batches.
    same = jnp.repeat(jnp.repeat(jnp.eye(sub_b, dtype=jnp.float32), Lq, axis=0),
                      Lk, axis=1)
    mask = (same - 1.0) * 1e9                      # (sub_b*Lq, sub_b*Lk)

    weight_spec = pl.BlockSpec((H, H), lambda b: (0, 0))
    bias_spec = pl.BlockSpec((1, H), lambda b: (0, 0))
    mask_spec = pl.BlockSpec((sub_b * Lq, sub_b * Lk), lambda b: (0, 0))

    kernel = functools.partial(_glimpse_kernel, sub_b=sub_b)

    out = pl.pallas_call(
        kernel,
        out_shape=jax.ShapeDtypeStruct((Bp, Lq, H), query.dtype),
        grid_spec=pltpu.PrefetchScalarGridSpec(
            num_scalar_prefetch=0,
            grid=(grid_b,),
            in_specs=[
                pl.BlockSpec((block_b, Lq, H), lambda b: (b, 0, 0)),   # query
                pl.BlockSpec((block_b, Lk, H), lambda b: (b, 0, 0)),   # ref
                weight_spec, bias_spec,                                 # q proj
                weight_spec, bias_spec,                                 # k proj
                weight_spec, bias_spec,                                 # v proj
                mask_spec,                                              # blk-diag mask
            ],
            out_specs=pl.BlockSpec((block_b, Lq, H), lambda b: (b, 0, 0)),
            scratch_shapes=[
                pltpu.VMEM((block_b * Lq, H), jnp.bfloat16),   # projected Q
                pltpu.VMEM((block_b * Lk, H), jnp.bfloat16),   # projected K
                pltpu.VMEM((block_b * Lk, H), jnp.bfloat16),   # projected V
            ],
        ),
        compiler_params=pltpu.CompilerParams(
            dimension_semantics=("parallel",),
            vmem_limit_bytes=_vmem_limit_bytes(block_b, Lq, Lk, H, sub_b)),
    )(q_bf, r_bf, wqT, bq2, wkT, bk2, wvT, bv2, mask)

    return out if Bp == B else out[:B]


def init_glimpse_params(key, hidden_dim):
    """Deterministic init mimicking torch.nn.Linear default (U[-1/sqrt(H), 1/sqrt(H)])."""
    bound = 1.0 / math.sqrt(hidden_dim)
    keys = jax.random.split(key, 6)
    wq = jax.random.uniform(keys[0], (hidden_dim, hidden_dim), jnp.float32, -bound, bound)
    bq = jax.random.uniform(keys[1], (hidden_dim,), jnp.float32, -bound, bound)
    wk = jax.random.uniform(keys[2], (hidden_dim, hidden_dim), jnp.float32, -bound, bound)
    bk = jax.random.uniform(keys[3], (hidden_dim,), jnp.float32, -bound, bound)
    wv = jax.random.uniform(keys[4], (hidden_dim, hidden_dim), jnp.float32, -bound, bound)
    bv = jax.random.uniform(keys[5], (hidden_dim,), jnp.float32, -bound, bound)
    return (wq, bq, wk, bk, wv, bv)


def glimpse_reference(query, ref, params):
    """Pure-JAX f32 reference matching the PyTorch forward exactly."""
    wq, bq, wk, bk, wv, bv = params
    Q = query @ wq.T + bq
    K = ref @ wk.T + bk
    V = ref @ wv.T + bv
    H = query.shape[-1]
    scores = jnp.einsum('bqh,bkh->bqk', Q, K) / math.sqrt(H)
    attn = jax.nn.softmax(scores, axis=-1)
    return jnp.einsum('bqk,bkh->bqh', attn, V)


if __name__ == "__main__":
    B, Lq, Lk, H = 2, 8, 8, 32

    key = jax.random.PRNGKey(0)
    k_query, k_ref, k_params = jax.random.split(key, 3)

    query = jax.random.normal(k_query, (B, Lq, H), jnp.float32)
    ref = jax.random.normal(k_ref, (B, Lk, H), jnp.float32)
    params = init_glimpse_params(k_params, H)

    out = jax.block_until_ready(glimpse_forward(query, ref, params))
    expected = jax.block_until_ready(glimpse_reference(query, ref, params))
    assert out.shape == (B, Lq, H)
    # Tolerance loosened vs. pure f32 because MXU operands are bf16 (f32 accum).
    assert jnp.allclose(out, expected, atol=3e-2, rtol=3e-2), "mismatch vs reference"

    # Extra checks: (a) multi sub-chunk fused block-diagonal attention path,
    # (b) cdiv + host-pad path for a batch that doesn't divide the block.
    for B2, note in ((64, "multi-chunk"), (5, "padded batch")):
        k1, k2 = jax.random.split(jax.random.PRNGKey(B2), 2)
        q2 = jax.random.normal(k1, (B2, Lq, H), jnp.float32)
        r2 = jax.random.normal(k2, (B2, Lk, H), jnp.float32)
        o2 = jax.block_until_ready(glimpse_forward(q2, r2, params))
        e2 = glimpse_reference(q2, r2, params)
        assert o2.shape == (B2, Lq, H), note
        assert jnp.allclose(o2, e2, atol=3e-2, rtol=3e-2), f"mismatch ({note})"

    print("KERNEL_OK")
</pallas_src>

<mosaic_0001>
module attributes {stable_mosaic.version = 11 : i64} {
  func.func @_glimpse_kernel(%arg0: i32, %arg1: memref<1x8x32xbf16, #tpu.memory_space<vmem>>, %arg2: memref<1x8x32xbf16, #tpu.memory_space<vmem>>, %arg3: memref<32x32xbf16, #tpu.memory_space<vmem>>, %arg4: memref<1x32xf32, #tpu.memory_space<vmem>>, %arg5: memref<32x32xbf16, #tpu.memory_space<vmem>>, %arg6: memref<1x32xf32, #tpu.memory_space<vmem>>, %arg7: memref<32x32xbf16, #tpu.memory_space<vmem>>, %arg8: memref<1x32xf32, #tpu.memory_space<vmem>>, %arg9: memref<8x8xf32, #tpu.memory_space<vmem>>, %arg10: memref<1x8x32xf32, #tpu.memory_space<vmem>>, %arg11: memref<8x32xbf16, #tpu.memory_space<vmem>>, %arg12: memref<8x32xbf16, #tpu.memory_space<vmem>>, %arg13: memref<8x32xbf16, #tpu.memory_space<vmem>>) attributes {dimension_semantics = [#tpu.dimension_semantics<parallel>], iteration_bounds = array<i64: 2>, scalar_prefetch = 0 : i64, scratch_operands = 3 : i64, tpu.core_type = #tpu.core_type<tc>, window_params = [{transform_indices = @transform_0, window_bounds = array<i64: 1, 8, 32>}, {transform_indices = @transform_1, window_bounds = array<i64: 1, 8, 32>}, {pipeline_mode = #tpu.pipeline_mode<synchronous>, transform_indices = @transform_2, window_bounds = array<i64: 32, 32>}, {pipeline_mode = #tpu.pipeline_mode<synchronous>, transform_indices = @transform_3, window_bounds = array<i64: 1, 32>}, {pipeline_mode = #tpu.pipeline_mode<synchronous>, transform_indices = @transform_4, window_bounds = array<i64: 32, 32>}, {pipeline_mode = #tpu.pipeline_mode<synchronous>, transform_indices = @transform_5, window_bounds = array<i64: 1, 32>}, {pipeline_mode = #tpu.pipeline_mode<synchronous>, transform_indices = @transform_6, window_bounds = array<i64: 32, 32>}, {pipeline_mode = #tpu.pipeline_mode<synchronous>, transform_indices = @transform_7, window_bounds = array<i64: 1, 32>}, {pipeline_mode = #tpu.pipeline_mode<synchronous>, transform_indices = @transform_8, window_bounds = array<i64: 8, 8>}, {transform_indices = @transform_9, window_bounds = array<i64: 1, 8, 32>}]} {
    %c0 = arith.constant 0 : index
    %c0_0 = arith.constant 0 : index
    %c0_1 = arith.constant 0 : index
    %0 = vector.load %arg1[%c0, %c0_0, %c0_1] : memref<1x8x32xbf16, #tpu.memory_space<vmem>>, vector<1x8x32xbf16>
    %1 = vector.shape_cast %0 : vector<1x8x32xbf16> to vector<8x32xbf16>
    %c0_2 = arith.constant 0 : index
    %c0_3 = arith.constant 0 : index
    %c0_4 = arith.constant 0 : index
    %2 = vector.load %arg2[%c0_2, %c0_3, %c0_4] : memref<1x8x32xbf16, #tpu.memory_space<vmem>>, vector<1x8x32xbf16>
    %3 = vector.shape_cast %2 : vector<1x8x32xbf16> to vector<8x32xbf16>
    %c0_5 = arith.constant 0 : index
    %c0_6 = arith.constant 0 : index
    %4 = vector.load %arg3[%c0_5, %c0_6] : memref<32x32xbf16, #tpu.memory_space<vmem>>, vector<32x32xbf16>
    %cst = arith.constant dense<0.000000e+00> : vector<8x32xf32>
    %5 = tpu.matmul %1, %4, %cst {dimension_numbers = #tpu.dot_dimension_numbers<[1], [0], [0], [1], [0, 0, 1, 1], [], []>} : vector<8x32xbf16>, vector<32x32xbf16>, vector<8x32xf32> -> vector<8x32xf32>
    %c0_7 = arith.constant 0 : index
    %c0_8 = arith.constant 0 : index
    %6 = vector.load %arg4[%c0_7, %c0_8] : memref<1x32xf32, #tpu.memory_space<vmem>>, vector<1x32xf32>
    %7 = vector.broadcast %6 : vector<1x32xf32> to vector<8x32xf32>
    %8 = arith.addf %5, %7 : vector<8x32xf32>
    %9 = arith.truncf %8 : vector<8x32xf32> to vector<8x32xbf16>
    %c0_9 = arith.constant 0 : index
    %c0_10 = arith.constant 0 : index
    %10 = vector.load %arg11[%c0_9, %c0_10] : memref<8x32xbf16, #tpu.memory_space<vmem>>, vector<8x32xbf16>
    tpu.vector_store %arg11[%c0_9, %c0_10], %9 {strides = array<i32>} : memref<8x32xbf16, #tpu.memory_space<vmem>>, vector<8x32xbf16>,
    %c0_11 = arith.constant 0 : index
    %c0_12 = arith.constant 0 : index
    %11 = vector.load %arg5[%c0_11, %c0_12] : memref<32x32xbf16, #tpu.memory_space<vmem>>, vector<32x32xbf16>
    %cst_13 = arith.constant dense<0.000000e+00> : vector<8x32xf32>
    %12 = tpu.matmul %3, %11, %cst_13 {dimension_numbers = #tpu.dot_dimension_numbers<[1], [0], [0], [1], [0, 0, 1, 1], [], []>} : vector<8x32xbf16>, vector<32x32xbf16>, vector<8x32xf32> -> vector<8x32xf32>
    %c0_14 = arith.constant 0 : index
    %c0_15 = arith.constant 0 : index
    %13 = vector.load %arg6[%c0_14, %c0_15] : memref<1x32xf32, #tpu.memory_space<vmem>>, vector<1x32xf32>
    %14 = vector.broadcast %13 : vector<1x32xf32> to vector<8x32xf32>
    %15 = arith.addf %12, %14 : vector<8x32xf32>
    %16 = arith.truncf %15 : vector<8x32xf32> to vector<8x32xbf16>
    %c0_16 = arith.constant 0 : index
    %c0_17 = arith.constant 0 : index
    %17 = vector.load %arg12[%c0_16, %c0_17] : memref<8x32xbf16, #tpu.memory_space<vmem>>, vector<8x32xbf16>
    tpu.vector_store %arg12[%c0_16, %c0_17], %16 {strides = array<i32>} : memref<8x32xbf16, #tpu.memory_space<vmem>>, vector<8x32xbf16>,
    %c0_18 = arith.constant 0 : index
    %c0_19 = arith.constant 0 : index
    %18 = vector.load %arg7[%c0_18, %c0_19] : memref<32x32xbf16, #tpu.memory_space<vmem>>, vector<32x32xbf16>
    %cst_20 = arith.constant dense<0.000000e+00> : vector<8x32xf32>
    %19 = tpu.matmul %3, %18, %cst_20 {dimension_numbers = #tpu.dot_dimension_numbers<[1], [0], [0], [1], [0, 0, 1, 1], [], []>} : vector<8x32xbf16>, vector<32x32xbf16>, vector<8x32xf32> -> vector<8x32xf32>
    %c0_21 = arith.constant 0 : index
    %c0_22 = arith.constant 0 : index
    %20 = vector.load %arg8[%c0_21, %c0_22] : memref<1x32xf32, #tpu.memory_space<vmem>>, vector<1x32xf32>
    %21 = vector.broadcast %20 : vector<1x32xf32> to vector<8x32xf32>
    %22 = arith.addf %19, %21 : vector<8x32xf32>
    %23 = arith.truncf %22 : vector<8x32xf32> to vector<8x32xbf16>
    %c0_23 = arith.constant 0 : index
    %c0_24 = arith.constant 0 : index
    %24 = vector.load %arg13[%c0_23, %c0_24] : memref<8x32xbf16, #tpu.memory_space<vmem>>, vector<8x32xbf16>
    tpu.vector_store %arg13[%c0_23, %c0_24], %23 {strides = array<i32>} : memref<8x32xbf16, #tpu.memory_space<vmem>>, vector<8x32xbf16>,
    %c0_25 = arith.constant 0 : index
    %c0_26 = arith.constant 0 : index
    %25 = vector.load %arg11[%c0_25, %c0_26] : memref<8x32xbf16, #tpu.memory_space<vmem>>, vector<8x32xbf16>
    %c0_27 = arith.constant 0 : index
    %c0_28 = arith.constant 0 : index
    %26 = vector.load %arg12[%c0_27, %c0_28] : memref<8x32xbf16, #tpu.memory_space<vmem>>, vector<8x32xbf16>
    %c0_29 = arith.constant 0 : index
    %c0_30 = arith.constant 0 : index
    %27 = vector.load %arg13[%c0_29, %c0_30] : memref<8x32xbf16, #tpu.memory_space<vmem>>, vector<8x32xbf16>
    "tpu.trace_start"() <{level = 10 : i32, message = "qh,kh->qk"}> : () -> ()
    %cst_31 = arith.constant dense<0.000000e+00> : vector<8x8xf32>
    %28 = tpu.matmul %25, %26, %cst_31 {dimension_numbers = #tpu.dot_dimension_numbers<[1], [1], [0], [0], [0, 0, 1, 0], [], []>} : vector<8x32xbf16>, vector<8x32xbf16>, vector<8x8xf32> -> vector<8x8xf32>
    "tpu.trace_stop"() : () -> ()
    %c0_32 = arith.constant 0 : index
    %c0_33 = arith.constant 0 : index
    %29 = vector.load %arg9[%c0_32, %c0_33] : memref<8x8xf32, #tpu.memory_space<vmem>>, vector<8x8xf32>
    %30 = arith.addf %28, %29 : vector<8x8xf32>
    %cst_34 = arith.constant dense<0xFF800000> : vector<8xf32>
    %31 = vector.multi_reduction <maximumf>, %30, %cst_34 [1] : vector<8x8xf32> to vector<8xf32>
    %32 = vector.shape_cast %31 : vector<8xf32> to vector<8x1xf32>
    %33 = vector.broadcast %32 : vector<8x1xf32> to vector<8x8xf32>
    %34 = arith.subf %30, %33 : vector<8x8xf32>
    %35 = math.exp %34 : vector<8x8xf32>
    %cst_35 = arith.constant dense<0.000000e+00> : vector<8xf32>
    %36 = vector.multi_reduction <add>, %35, %cst_35 [1] : vector<8x8xf32> to vector<8xf32>
    %37 = vector.shape_cast %36 : vector<8xf32> to vector<8x1xf32>
    %38 = tpu.reciprocal %37 {approx = true} : vector<8x1xf32> -> vector<8x1xf32>
    %39 = vector.broadcast %38 : vector<8x1xf32> to vector<8x8xf32>
    %40 = arith.mulf %35, %39 : vector<8x8xf32>
    %41 = arith.truncf %40 : vector<8x8xf32> to vector<8x8xbf16>
    %cst_36 = arith.constant dense<0.000000e+00> : vector<8x32xf32>
    %42 = tpu.matmul %41, %27, %cst_36 {dimension_numbers = #tpu.dot_dimension_numbers<[1], [0], [0], [1], [0, 0, 1, 1], [], []>} : vector<8x8xbf16>, vector<8x32xbf16>, vector<8x32xf32> -> vector<8x32xf32>
    %43 = vector.shape_cast %42 : vector<8x32xf32> to vector<1x8x32xf32>
    %c0_37 = arith.constant 0 : index
    %c0_38 = arith.constant 0 : index
    %c0_39 = arith.constant 0 : index
    %44 = vector.load %arg10[%c0_37, %c0_38, %c0_39] : memref<1x8x32xf32, #tpu.memory_space<vmem>>, vector<1x8x32xf32>
    tpu.vector_store %arg10[%c0_37, %c0_38, %c0_39], %43 {strides = array<i32>} : memref<1x8x32xf32, #tpu.memory_space<vmem>>, vector<1x8x32xf32>,
    return
  }
  func.func @transform_0(%arg0: i32) -> (i32, i32, i32) {
    %c0_i32 = arith.constant 0 : i32
    %c0_i32_0 = arith.constant 0 : i32
    %c0_i32_1 = arith.constant 0 : i32
    return %arg0, %c0_i32, %c0_i32_0 : i32, i32, i32
  }
  func.func @transform_1(%arg0: i32) -> (i32, i32, i32) {
    %c0_i32 = arith.constant 0 : i32
    %c0_i32_0 = arith.constant 0 : i32
    %c0_i32_1 = arith.constant 0 : i32
    return %arg0, %c0_i32, %c0_i32_0 : i32, i32, i32
  }
  func.func @transform_2(%arg0: i32) -> (i32, i32) {
    %c0_i32 = arith.constant 0 : i32
    %c0_i32_0 = arith.constant 0 : i32
    %c0_i32_1 = arith.constant 0 : i32
    return %c0_i32, %c0_i32_0 : i32, i32
  }
  func.func @transform_3(%arg0: i32) -> (i32, i32) {
    %c0_i32 = arith.constant 0 : i32
    %c0_i32_0 = arith.constant 0 : i32
    %c0_i32_1 = arith.constant 0 : i32
    return %c0_i32, %c0_i32_0 : i32, i32
  }
  func.func @transform_4(%arg0: i32) -> (i32, i32) {
    %c0_i32 = arith.constant 0 : i32
    %c0_i32_0 = arith.constant 0 : i32
    %c0_i32_1 = arith.constant 0 : i32
    return %c0_i32, %c0_i32_0 : i32, i32
  }
  func.func @transform_5(%arg0: i32) -> (i32, i32) {
    %c0_i32 = arith.constant 0 : i32
    %c0_i32_0 = arith.constant 0 : i32
    %c0_i32_1 = arith.constant 0 : i32
    return %c0_i32, %c0_i32_0 : i32, i32
  }
  func.func @transform_6(%arg0: i32) -> (i32, i32) {
    %c0_i32 = arith.constant 0 : i32
    %c0_i32_0 = arith.constant 0 : i32
    %c0_i32_1 = arith.constant 0 : i32
    return %c0_i32, %c0_i32_0 : i32, i32
  }
  func.func @transform_7(%arg0: i32) -> (i32, i32) {
    %c0_i32 = arith.constant 0 : i32
    %c0_i32_0 = arith.constant 0 : i32
    %c0_i32_1 = arith.constant 0 : i32
    return %c0_i32, %c0_i32_0 : i32, i32
  }
  func.func @transform_8(%arg0: i32) -> (i32, i32) {
    %c0_i32 = arith.constant 0 : i32
    %c0_i32_0 = arith.constant 0 : i32
    %c0_i32_1 = arith.constant 0 : i32
    return %c0_i32, %c0_i32_0 : i32, i32
  }
  func.func @transform_9(%arg0: i32) -> (i32, i32, i32) {
    %c0_i32 = arith.constant 0 : i32
    %c0_i32_0 = arith.constant 0 : i32
    %c0_i32_1 = arith.constant 0 : i32
    return %arg0, %c0_i32, %c0_i32_0 : i32, i32, i32
  }
}

</mosaic_0001>

<llo_original>
// kernel: tpu_custom_call.1
$region0: #{tpu_custom_call.1}
  #allocation0 [shape = 'u32[]', space=smem, size = 0x4, offset = 0x4, fixed_abs, tag = 'smem constant byte address 0x4 - core index']
  #allocation1 [shape = 'u32[72,128]{1,0:T(1,128)}', space=vmem, size = 0x9000, scoped, tag = 'internal scratch']
  #allocation2 [shape = 'bf16[8,32]{1,0:T(8,128)(2,1)}', space=vmem, size = 0x800, scoped, tag = 'scratch operand']
  #allocation3 [shape = 'bf16[8,32]{1,0:T(8,128)(2,1)}', space=vmem, size = 0x800, scoped, tag = 'scratch operand']
  #allocation4 [shape = 'bf16[8,32]{1,0:T(8,128)(2,1)}', space=vmem, size = 0x800, scoped, tag = 'scratch operand']
  %s0 = inlined_call_operand.hbm [shape: bf16[2,8,32], index: 0, kind: input, shape index: {}]
  %s1 = inlined_call_operand.hbm [shape: bf16[2,8,32], index: 1, kind: input, shape index: {}]
  %s2 = inlined_call_operand.hbm [shape: bf16[32,32], index: 2, kind: input, shape index: {}]
  %s3 = inlined_call_operand.vmem [shape: f32[1,32], index: 3, kind: input, shape index: {}]
  %s4 = inlined_call_operand.hbm [shape: bf16[32,32], index: 4, kind: input, shape index: {}]
  %s5 = inlined_call_operand.vmem [shape: f32[1,32], index: 5, kind: input, shape index: {}]
  %s6 = inlined_call_operand.hbm [shape: bf16[32,32], index: 6, kind: input, shape index: {}]
  %s7 = inlined_call_operand.vmem [shape: f32[1,32], index: 7, kind: input, shape index: {}]
  %s8 = inlined_call_operand.hbm [shape: f32[8,8], index: 8, kind: input, shape index: {}]
  %s9 = inlined_call_operand.hbm [shape: f32[2,8,32], index: 9, kind: output, shape index: {}]
  %s10 = sld [smem:[#allocation0]]
  $region93: #{tpu_custom_call.1} parent=0
    _
  %s12 = ssub.s32 1, %s10
  %s13 = scalar_select 0, %s12, %s10
  $region1: #{tpu_custom_call.1} parent=0
    #allocation5 [shape = 'u8[4096]{0}', space=vmem, size = 0x1000, scoped, tag = 'input window, operand 0']
    #allocation6 [shape = 's32[2]{0}', space=sflag, size = 0x8, scoped, tag = 'scoped memory for tpu_custom_call.1']
    #allocation7 [shape = 's32[2]{0}', space=sflag, size = 0x8, scoped, tag = 'scoped memory for tpu_custom_call.1']
    #allocation8 [shape = 'u8[4096]{0}', space=vmem, size = 0x1000, scoped, tag = 'input window, operand 1']
    #allocation9 [shape = 's32[2]{0}', space=sflag, size = 0x8, scoped, tag = 'scoped memory for tpu_custom_call.1']
    #allocation10 [shape = 'u8[8192]{0}', space=vmem, size = 0x2000, scoped, tag = 'input window, operand 2, single buffered']
    #allocation11 [shape = 'u8[8192]{0}', space=vmem, size = 0x2000, scoped, tag = 'input window, operand 4, single buffered']
    #allocation12 [shape = 's32[1]{0}', space=sflag, size = 0x4, scoped, tag = 'scoped memory for tpu_custom_call.1']
    #allocation13 [shape = 'u8[8192]{0}', space=vmem, size = 0x2000, scoped, tag = 'input window, operand 6, single buffered']
    #allocation14 [shape = 'u8[4096]{0}', space=vmem, size = 0x1000, scoped, tag = 'input window, operand 8, single buffered']
    #allocation15 [shape = 's32[1]{0}', space=sflag, size = 0x4, scoped, tag = 'scoped memory for tpu_custom_call.1']
    #allocation16 [shape = 'u8[8192]{0}', space=vmem, size = 0x2000, scoped, tag = 'output window, operand 0']
    %14 = vsyncpa [#allocation6], 0
    %s15 = scalar_lea.sflag [#allocation6], 1
    %16 = vsyncpa %s15, 0
    %17 = vsyncpa [#allocation9], 0
    %s18 = scalar_lea.sflag [#allocation9], 1
    %19 = vsyncpa %s18, 0
    %20 = vsyncpa [#allocation12], 0
    %21 = vsyncpa [#allocation15], 0
    %22 = vsyncpa [#allocation7], 0
    %s23 = scalar_lea.sflag [#allocation7], 1
    %24 = vsyncpa %s23, 0
    loop: start=0, step=1, limit=4
    $region2: #{tpu_custom_call.1} parent=1 // loop_pre_header
      _
    $region3: #{tpu_custom_call.1} parent=1 // loop_header
      %s26 = sphi 0, %s30
      %p27 = scmp.ge.s32.totalorder %s26, 4
      %s36 = sphi 0, %s38
      %s39 = sphi 0, %s36
      %s40 = sphi 0, %s39
      %s56 = sphi 0, %s40
      %s62 = sphi 0, %s64
      %s65 = sphi 0, %s62
      %s66 = sphi 0, %s65
      %s82 = sphi 0, %s66
      %s86 = sphi 0, %s86
      %s88 = sphi 0, %s86
      %s89 = sphi 0, %s88
      %s103 = sphi 0, %s89
      %s107 = sphi 0, %s107
      %s109 = sphi 0, %s107
      %s110 = sphi 0, %s109
      %s124 = sphi 0, %s110
      %s128 = sphi 0, %s128
      %s130 = sphi 0, %s128
      %s131 = sphi 0, %s130
      %s145 = sphi 0, %s131
      %s149 = sphi 0, %s149
      %s151 = sphi 0, %s149
      %s152 = sphi 0, %s151
      %s166 = sphi 0, %s152
      %s170 = sphi 0, %s170
      %s172 = sphi 0, %s170
      %s173 = sphi 0, %s172
      %s187 = sphi 0, %s173
      %s191 = sphi 0, %s191
      %s193 = sphi 0, %s191
      %s194 = sphi 0, %s193
      %s208 = sphi 0, %s194
      %s212 = sphi 0, %s212
      %s214 = sphi 0, %s212
      %s215 = sphi 0, %s214
      %s229 = sphi 0, %s215
      %s235 = sphi 0, %s237
      %s238 = sphi 0, %s235
      %s239 = sphi 0, %s238
      %s255 = sphi 0, %s239
    $region4: #{tpu_custom_call.1} parent=1 // loop_header_branch
      %29 = sbr.rel (%p27) target = $region8
    $region5: #{tpu_custom_call.1} parent=1 // loop_body
      %s31 = ssub.s32 %s26, 1
      %s32 = ssub.s32 %s26, 2
      %s33 = sadd.s32 %s26, 1
      %s34 = ssub.s32 %s26, %s33
      %p35 = scmp.eq.s32.totalorder %s34, 0
      %s37 = sadd.s32 %s36, 1
      %s38 = scalar_select %p35, %s36, %s37
      %p41 = pneg %p35
      %p42 = scmp.eq.s32.totalorder %s26, 1
      %p43 = por %p41, %p42
      %p44 = scmp.ne.s32.totalorder %s36, %s39
      %p45 = scmp.eq.s32.totalorder %s26, 0
      %p46 = por %p44, %p45
      %p47 = scmp.ne.s32.totalorder %s36, %s39
      %p48 = scmp.eq.s32.totalorder %s31, 1
      %p49 = por %p47, %p48
      %p50 = scmp.ne.s32.totalorder %s39, %s40
      %p51 = scmp.eq.s32.totalorder %s31, 0
      %p52 = por %p50, %p51
      %p53 = scmp.ne.s32.totalorder %s39, %s40
      %p54 = scmp.eq.s32.totalorder %s32, 1
      %p55 = por %p53, %p54
      %p57 = scmp.ne.s32.totalorder %s40, %s56
      %p58 = scmp.eq.s32.totalorder %s32, 0
      %p59 = por %p57, %p58
      %s60 = ssub.s32 %s26, %s33
      %p61 = scmp.eq.s32.totalorder %s60, 0
      %s63 = sadd.s32 %s62, 1
      %s64 = scalar_select %p61, %s62, %s63
      %p67 = pneg %p61
      %p68 = scmp.eq.s32.totalorder %s26, 1
      %p69 = por %p67, %p68
      %p70 = scmp.ne.s32.totalorder %s62, %s65
      %p71 = scmp.eq.s32.totalorder %s26, 0
      %p72 = por %p70, %p71
      %p73 = scmp.ne.s32.totalorder %s62, %s65
      %p74 = scmp.eq.s32.totalorder %s31, 1
      %p75 = por %p73, %p74
      %p76 = scmp.ne.s32.totalorder %s65, %s66
      %p77 = scmp.eq.s32.totalorder %s31, 0
      %p78 = por %p76, %p77
      %p79 = scmp.ne.s32.totalorder %s65, %s66
      %p80 = scmp.eq.s32.totalorder %s32, 1
      %p81 = por %p79, %p80
      %p83 = scmp.ne.s32.totalorder %s66, %s82
      %p84 = scmp.eq.s32.totalorder %s32, 0
      %p85 = por %p83, %p84
      %s87 = sadd.s32 %s86, 1
      %p90 = scmp.eq.s32.totalorder %s26, 1
      %p91 = scmp.ne.s32.totalorder %s86, %s88
      %p92 = scmp.eq.s32.totalorder %s26, 0
      %p93 = por %p91, %p92
      %p94 = scmp.ne.s32.totalorder %s86, %s88
      %p95 = scmp.eq.s32.totalorder %s31, 1
      %p96 = por %p94, %p95
      %p97 = scmp.ne.s32.totalorder %s88, %s89
      %p98 = scmp.eq.s32.totalorder %s31, 0
      %p99 = por %p97, %p98
      %p100 = scmp.ne.s32.totalorder %s88, %s89
      %p101 = scmp.eq.s32.totalorder %s32, 1
      %p102 = por %p100, %p101
      %p104 = scmp.ne.s32.totalorder %s89, %s103
      %p105 = scmp.eq.s32.totalorder %s32, 0
      %p106 = por %p104, %p105
      %s108 = sadd.s32 %s107, 1
      %p111 = scmp.eq.s32.totalorder %s26, 1
      %p112 = scmp.ne.s32.totalorder %s107, %s109
      %p113 = scmp.eq.s32.totalorder %s26, 0
      %p114 = por %p112, %p113
      %p115 = scmp.ne.s32.totalorder %s107, %s109
      %p116 = scmp.eq.s32.totalorder %s31, 1
      %p117 = por %p115, %p116
      %p118 = scmp.ne.s32.totalorder %s109, %s110
      %p119 = scmp.eq.s32.totalorder %s31, 0
      %p120 = por %p118, %p119
      %p121 = scmp.ne.s32.totalorder %s109, %s110
      %p122 = scmp.eq.s32.totalorder %s32, 1
      %p123 = por %p121, %p122
      %p125 = scmp.ne.s32.totalorder %s110, %s124
      %p126 = scmp.eq.s32.totalorder %s32, 0
      %p127 = por %p125, %p126
      %s129 = sadd.s32 %s128, 1
      %p132 = scmp.eq.s32.totalorder %s26, 1
      %p133 = scmp.ne.s32.totalorder %s128, %s130
      %p134 = scmp.eq.s32.totalorder %s26, 0
      %p135 = por %p133, %p134
      %p136 = scmp.ne.s32.totalorder %s128, %s130
      %p137 = scmp.eq.s32.totalorder %s31, 1
      %p138 = por %p136, %p137
      %p139 = scmp.ne.s32.totalorder %s130, %s131
      %p140 = scmp.eq.s32.totalorder %s31, 0
      %p141 = por %p139, %p140
      %p142 = scmp.ne.s32.totalorder %s130, %s131
      %p143 = scmp.eq.s32.totalorder %s32, 1
      %p144 = por %p142, %p143
      %p146 = scmp.ne.s32.totalorder %s131, %s145
      %p147 = scmp.eq.s32.totalorder %s32, 0
      %p148 = por %p146, %p147
      %s150 = sadd.s32 %s149, 1
      %p153 = scmp.eq.s32.totalorder %s26, 1
      %p154 = scmp.ne.s32.totalorder %s149, %s151
      %p155 = scmp.eq.s32.totalorder %s26, 0
      %p156 = por %p154, %p155
      %p157 = scmp.ne.s32.totalorder %s149, %s151
      %p158 = scmp.eq.s32.totalorder %s31, 1
      %p159 = por %p157, %p158
      %p160 = scmp.ne.s32.totalorder %s151, %s152
      %p161 = scmp.eq.s32.totalorder %s31, 0
      %p162 = por %p160, %p161
      %p163 = scmp.ne.s32.totalorder %s151, %s152
      %p164 = scmp.eq.s32.totalorder %s32, 1
      %p165 = por %p163, %p164
      %p167 = scmp.ne.s32.totalorder %s152, %s166
      %p168 = scmp.eq.s32.totalorder %s32, 0
      %p169 = por %p167, %p168
      %s171 = sadd.s32 %s170, 1
      %p174 = scmp.eq.s32.totalorder %s26, 1
      %p175 = scmp.ne.s32.totalorder %s170, %s172
      %p176 = scmp.eq.s32.totalorder %s26, 0
      %p177 = por %p175, %p176
      %p178 = scmp.ne.s32.totalorder %s170, %s172
      %p179 = scmp.eq.s32.totalorder %s31, 1
      %p180 = por %p178, %p179
      %p181 = scmp.ne.s32.totalorder %s172, %s173
      %p182 = scmp.eq.s32.totalorder %s31, 0
      %p183 = por %p181, %p182
      %p184 = scmp.ne.s32.totalorder %s172, %s173
      %p185 = scmp.eq.s32.totalorder %s32, 1
      %p186 = por %p184, %p185
      %p188 = scmp.ne.s32.totalorder %s173, %s187
      %p189 = scmp.eq.s32.totalorder %s32, 0
      %p190 = por %p188, %p189
      %s192 = sadd.s32 %s191, 1
      %p195 = scmp.eq.s32.totalorder %s26, 1
      %p196 = scmp.ne.s32.totalorder %s191, %s193
      %p197 = scmp.eq.s32.totalorder %s26, 0
      %p198 = por %p196, %p197
      %p199 = scmp.ne.s32.totalorder %s191, %s193
      %p200 = scmp.eq.s32.totalorder %s31, 1
      %p201 = por %p199, %p200
      %p202 = scmp.ne.s32.totalorder %s193, %s194
      %p203 = scmp.eq.s32.totalorder %s31, 0
      %p204 = por %p202, %p203
      %p205 = scmp.ne.s32.totalorder %s193, %s194
      %p206 = scmp.eq.s32.totalorder %s32, 1
      %p207 = por %p205, %p206
      %p209 = scmp.ne.s32.totalorder %s194, %s208
      %p210 = scmp.eq.s32.totalorder %s32, 0
      %p211 = por %p209, %p210
      %s213 = sadd.s32 %s212, 1
      %p216 = scmp.eq.s32.totalorder %s26, 1
      %p217 = scmp.ne.s32.totalorder %s212, %s214
      %p218 = scmp.eq.s32.totalorder %s26, 0
      %p219 = por %p217, %p218
      %p220 = scmp.ne.s32.totalorder %s212, %s214
      %p221 = scmp.eq.s32.totalorder %s31, 1
      %p222 = por %p220, %p221
      %p223 = scmp.ne.s32.totalorder %s214, %s215
      %p224 = scmp.eq.s32.totalorder %s31, 0
      %p225 = por %p223, %p224
      %p226 = scmp.ne.s32.totalorder %s214, %s215
      %p227 = scmp.eq.s32.totalorder %s32, 1
      %p228 = por %p226, %p227
      %p230 = scmp.ne.s32.totalorder %s215, %s229
      %p231 = scmp.eq.s32.totalorder %s32, 0
      %p232 = por %p230, %p231
      %s233 = ssub.s32 %s26, %s33
      %p234 = scmp.eq.s32.totalorder %s233, 0
      %s236 = sadd.s32 %s235, 1
      %s237 = scalar_select %p234, %s235, %s236
      %p240 = pneg %p234
      %p241 = scmp.eq.s32.totalorder %s26, 1
      %p242 = por %p240, %p241
      %p243 = scmp.ne.s32.totalorder %s235, %s238
      %p244 = scmp.eq.s32.totalorder %s26, 0
      %p245 = por %p243, %p244
      %p246 = scmp.ne.s32.totalorder %s235, %s238
      %p247 = scmp.eq.s32.totalorder %s31, 1
      %p248 = por %p246, %p247
      %p249 = scmp.ne.s32.totalorder %s238, %s239
      %p250 = scmp.eq.s32.totalorder %s31, 0
      %p251 = por %p249, %p250
      %p252 = scmp.ne.s32.totalorder %s238, %s239
      %p253 = scmp.eq.s32.totalorder %s32, 1
      %p254 = por %p252, %p253
      %p256 = scmp.ne.s32.totalorder %s239, %s255
      %p257 = scmp.eq.s32.totalorder %s32, 0
      %p258 = por %p256, %p257
      %p259 = scmp.le.s32.totalorder 1, %s26
      %p260 = scmp.lt.s32.totalorder %s26, 3
      %p261 = pnand %p259, %p260
      %p262 = pneg %p261
      // Predicated region
      $region9: #{tpu_custom_call.1} parent=5 // pred_check
        _
      $region10: #{tpu_custom_call.1} parent=5 // pred_check_branch
        %264 = sbr.rel (%p261) target = $region12
      $region11: #{tpu_custom_call.1} parent=5 // pred_region
        %s265 = ssub.s32 %s26, 1
        // Predicated region
        $region13: #{tpu_custom_call.1} parent=11 // pred_check
          %p266 = pneg %p99
        $region14: #{tpu_custom_call.1} parent=11 // pred_check_branch
          %268 = sbr.rel (%p266) target = $region16
        $region15: #{tpu_custom_call.1} parent=11 // pred_region
          %270 = vsyncadd [#allocation9], 0
          %s271 = sshll.u32 %s2, 4
          %s272 = int_to_ptr.hbm [resolvable:$true] %s271
          %s273 = sshll.u32 [#allocation10], 4
          %s274 = int_to_ptr.vmem [resolvable:$true] %s273
          %279 = dma.hbm_to_vmem [thread:$0]  %s272, 256, %s274, [#allocation9], 64, 64, 4
        $region16: #{tpu_custom_call.1} parent=11 // pred_fallthru
          _
        // Predicated region
        $region17: #{tpu_custom_call.1} parent=11 // pred_check
          %p280 = pneg %p120
        $region18: #{tpu_custom_call.1} parent=11 // pred_check_branch
          %282 = sbr.rel (%p280) target = $region20
        $region19: #{tpu_custom_call.1} parent=11 // pred_region
          _
        $region20: #{tpu_custom_call.1} parent=11 // pred_fallthru
          _
        // Predicated region
        $region21: #{tpu_custom_call.1} parent=11 // pred_check
          %p283 = pneg %p141
        $region22: #{tpu_custom_call.1} parent=11 // pred_check_branch
          %285 = sbr.rel (%p283) target = $region24
        $region23: #{tpu_custom_call.1} parent=11 // pred_region
          %287 = vsyncadd [#allocation12], 0
          %s288 = sshll.u32 %s4, 4
          %s289 = int_to_ptr.hbm [resolvable:$true] %s288
          %s290 = sshll.u32 [#allocation11], 4
          %s291 = int_to_ptr.vmem [resolvable:$true] %s290
          %296 = dma.hbm_to_vmem [thread:$0]  %s289, 256, %s291, [#allocation12], 64, 64, 4
        $region24: #{tpu_custom_call.1} parent=11 // pred_fallthru
          _
        // Predicated region
        $region25: #{tpu_custom_call.1} parent=11 // pred_check
          %p297 = pneg %p162
        $region26: #{tpu_custom_call.1} parent=11 // pred_check_branch
          %299 = sbr.rel (%p297) target = $region28
        $region27: #{tpu_custom_call.1} parent=11 // pred_region
          _
        $region28: #{tpu_custom_call.1} parent=11 // pred_fallthru
          _
        // Predicated region
        $region29: #{tpu_custom_call.1} parent=11 // pred_check
          %p300 = pneg %p183
        $region30: #{tpu_custom_call.1} parent=11 // pred_check_branch
          %302 = sbr.rel (%p300) target = $region32
        $region31: #{tpu_custom_call.1} parent=11 // pred_region
          %304 = vsyncadd [#allocation12], 0
          %s305 = sshll.u32 %s6, 4
          %s306 = int_to_ptr.hbm [resolvable:$true] %s305
          %s307 = sshll.u32 [#allocation13], 4
          %s308 = int_to_ptr.vmem [resolvable:$true] %s307
          %313 = dma.hbm_to_vmem [thread:$0]  %s306, 256, %s308, [#allocation12], 64, 64, 4
        $region32: #{tpu_custom_call.1} parent=11 // pred_fallthru
          _
        // Predicated region
        $region33: #{tpu_custom_call.1} parent=11 // pred_check
          %p314 = pneg %p204
        $region34: #{tpu_custom_call.1} parent=11 // pred_check_branch
          %316 = sbr.rel (%p314) target = $region36
        $region35: #{tpu_custom_call.1} parent=11 // pred_region
          _
        $region36: #{tpu_custom_call.1} parent=11 // pred_fallthru
          _
        // Predicated region
        $region37: #{tpu_custom_call.1} parent=11 // pred_check
          %p317 = pneg %p225
        $region38: #{tpu_custom_call.1} parent=11 // pred_check_branch
          %319 = sbr.rel (%p317) target = $region40
        $region39: #{tpu_custom_call.1} parent=11 // pred_region
          %321 = vsyncadd [#allocation15], 0
          %s323 = sshll.u32 %s8, 4
          %s324 = int_to_ptr.hbm [resolvable:$true] %s323
          %s325 = sshll.u32 [#allocation14], 4
          %s326 = int_to_ptr.vmem [resolvable:$true] %s325
          %328 = dma.hbm_to_vmem [thread:$0]  %s324, 128, %s326, [#allocation15]
        $region40: #{tpu_custom_call.1} parent=11 // pred_fallthru
          _
      $region12: #{tpu_custom_call.1} parent=5 // pred_fallthru
        _
      %p329 = scmp.lt.s32.totalorder %s26, 2
      // Predicated region
      $region41: #{tpu_custom_call.1} parent=5 // pred_check
        %p330 = pneg %p329
      $region42: #{tpu_custom_call.1} parent=5 // pred_check_branch
        %332 = sbr.rel (%p330) target = $region44
      $region43: #{tpu_custom_call.1} parent=5 // pred_region
        // Predicated region
        $region45: #{tpu_custom_call.1} parent=43 // pred_check
          %p333 = pneg %p46
        $region46: #{tpu_custom_call.1} parent=43 // pred_check_branch
          %335 = sbr.rel (%p333) target = $region48
        $region47: #{tpu_custom_call.1} parent=43 // pred_region
          %s336 = sand.u32 %s36, 1
          %s337 = scalar_lea.sflag [#allocation6], %s336
          %s338 = sand.u32 %s36, 1
          %s339 = smul.addr %s338, 4
          %s340 = scalar_lea.vmem [#allocation5], %s339
          %342 = vsyncadd %s337, 0
          %s343 = smul.addr %s26, 4
          %s344 = scalar_lea.hbm %s0, %s343
          %s346 = sshll.u32 %s344, 4
          %s347 = int_to_ptr.hbm [resolvable:$true] %s346
          %s348 = sshll.u32 %s340, 4
          %s349 = int_to_ptr.vmem [resolvable:$true] %s348
          %351 = dma.hbm_to_vmem [thread:$0]  %s347, 64, %s349, %s337
        $region48: #{tpu_custom_call.1} parent=43 // pred_fallthru
          _
        // Predicated region
        $region49: #{tpu_custom_call.1} parent=43 // pred_check
          %p352 = pneg %p72
        $region50: #{tpu_custom_call.1} parent=43 // pred_check_branch
          %354 = sbr.rel (%p352) target = $region52
        $region51: #{tpu_custom_call.1} parent=43 // pred_region
          %s355 = sand.u32 %s26, 1
          %s356 = scalar_lea.sflag [#allocation9], %s355
          %s357 = sand.u32 %s62, 1
          %s358 = smul.addr %s357, 4
          %s359 = scalar_lea.vmem [#allocation8], %s358
          %361 = vsyncadd %s356, 0
          %s362 = smul.addr %s26, 4
          %s363 = scalar_lea.hbm %s1, %s362
          %s365 = sshll.u32 %s363, 4
          %s366 = int_to_ptr.hbm [resolvable:$true] %s365
          %s367 = sshll.u32 %s359, 4
          %s368 = int_to_ptr.vmem [resolvable:$true] %s367
          %370 = dma.hbm_to_vmem [thread:$0]  %s366, 64, %s368, %s356
        $region52: #{tpu_custom_call.1} parent=43 // pred_fallthru
          _
      $region44: #{tpu_custom_call.1} parent=5 // pred_fallthru
        _
      %p371 = scmp.le.s32.totalorder 1, %s26
      %p372 = scmp.lt.s32.totalorder %s26, 3
      %p373 = pnand %p371, %p372
      %p374 = pneg %p373
      // Predicated region
      $region53: #{tpu_custom_call.1} parent=5 // pred_check
        _
      $region54: #{tpu_custom_call.1} parent=5 // pred_check_branch
        %376 = sbr.rel (%p373) target = $region56
      $region55: #{tpu_custom_call.1} parent=5 // pred_region
        %s377 = ssub.s32 %s26, 1
        %s378 = sand.u32 %s39, 1
        %s379 = scalar_lea.sflag [#allocation6], %s378
        %s380 = sand.u32 %s39, 1
        %s381 = smul.addr %s380, 4
        %s382 = scalar_lea.vmem [#allocation5], %s381
        // Predicated region
        $region57: #{tpu_custom_call.1} parent=55 // pred_check
          %p383 = pneg %p52
        $region58: #{tpu_custom_call.1} parent=55 // pred_check_branch
          %385 = sbr.rel (%p383) target = $region60
        $region59: #{tpu_custom_call.1} parent=55 // pred_region
          %387 = dma.done %s379, 64
        $region60: #{tpu_custom_call.1} parent=55 // pred_fallthru
          _
        %s388 = sand.u32 %s31, 1
        %s389 = scalar_lea.sflag [#allocation9], %s388
        %s390 = sand.u32 %s65, 1
        %s391 = smul.addr %s390, 4
        %s392 = scalar_lea.vmem [#allocation8], %s391
        // Predicated region
        $region61: #{tpu_custom_call.1} parent=55 // pred_check
          %p393 = pneg %p78
        $region62: #{tpu_custom_call.1} parent=55 // pred_check_branch
          %395 = sbr.rel (%p393) target = $region64
        $region63: #{tpu_custom_call.1} parent=55 // pred_region
          %397 = dma.done %s389, 64
        $region64: #{tpu_custom_call.1} parent=55 // pred_fallthru
          _
        // Predicated region
        $region65: #{tpu_custom_call.1} parent=55 // pred_check
          %p398 = pneg %p99
        $region66: #{tpu_custom_call.1} parent=55 // pred_check_branch
          %400 = sbr.rel (%p398) target = $region68
        $region67: #{tpu_custom_call.1} parent=55 // pred_region
          %402 = dma.done [#allocation9], 256
        $region68: #{tpu_custom_call.1} parent=55 // pred_fallthru
          _
        // Predicated region
        $region69: #{tpu_custom_call.1} parent=55 // pred_check
          %p403 = pneg %p141
        $region70: #{tpu_custom_call.1} parent=55 // pred_check_branch
          %405 = sbr.rel (%p403) target = $region72
        $region71: #{tpu_custom_call.1} parent=55 // pred_region
          %407 = dma.done [#allocation12], 256
        $region72: #{tpu_custom_call.1} parent=55 // pred_fallthru
          _
        // Predicated region
        $region73: #{tpu_custom_call.1} parent=55 // pred_check
          %p408 = pneg %p183
        $region74: #{tpu_custom_call.1} parent=55 // pred_check_branch
          %410 = sbr.rel (%p408) target = $region76
        $region75: #{tpu_custom_call.1} parent=55 // pred_region
          %412 = dma.done [#allocation12], 256
        $region76: #{tpu_custom_call.1} parent=55 // pred_fallthru
          _
        // Predicated region
        $region77: #{tpu_custom_call.1} parent=55 // pred_check
          %p413 = pneg %p225
        $region78: #{tpu_custom_call.1} parent=55 // pred_check_branch
          %415 = sbr.rel (%p413) target = $region80
        $region79: #{tpu_custom_call.1} parent=55 // pred_region
          %417 = dma.done [#allocation15], 128
        $region80: #{tpu_custom_call.1} parent=55 // pred_fallthru
          _
        %s418 = sand.u32 %s39, 1
        %s419 = scalar_lea.sflag [#allocation6], %s418
        %s420 = sand.u32 %s39, 1
        %s421 = smul.addr %s420, 4
        %s422 = scalar_lea.vmem [#allocation5], %s421
        %p423 = pneg %p52
        %p424 = pneg %p49
        %s425 = sand.u32 %s31, 1
        %s426 = scalar_lea.sflag [#allocation9], %s425
        %s427 = sand.u32 %s65, 1
        %s428 = smul.addr %s427, 4
        %s429 = scalar_lea.vmem [#allocation8], %s428
        %p430 = pneg %p78
        %p431 = pneg %p75
        %p432 = pneg %p99
        %p433 = pneg %p96
        %p434 = pneg %p120
        %p435 = pneg %p117
        %p436 = pneg %p141
        %p437 = pneg %p138
        %p438 = pneg %p162
        %p439 = pneg %p159
        %p440 = pneg %p183
        %p441 = pneg %p180
        %p442 = pneg %p204
        %p443 = pneg %p201
        %p444 = pneg %p225
        %p445 = pneg %p222
        %p446 = pneg %p251
        %p447 = pneg %p248
        %s448 = sand.u32 %s238, 1
        %s449 = scalar_lea.sflag [#allocation7], %s448
        %s450 = sand.u32 %s238, 1
        %s451 = smul.addr %s450, 8
        %s452 = scalar_lea.vmem [#allocation16], %s451
        %v454 = vld [vmem:[%s382] sm:$0xf]
        %v455 = vld [vmem:[%s392] sm:$0xf]
        %v456 = vld [vmem:[#allocation10] sm:$0xf]
        %v457 = vld [vmem:[#allocation10 + $0x4] sm:$0xf]
        %v458 = vld [vmem:[#allocation10 + $0x8] sm:$0xf]
        %v459 = vld [vmem:[#allocation10 + $0xc] sm:$0xf]
        %v460 = vld [vmem:[%s3] sm:$0x1]
        %v462 = vperm.slane %v460, 0
        %v468 = vunpack.c.l.b16 %v456
        %v469 = vunpack.c.l.b16 %v457
        %v470 = vunpack.c.l.b16 %v458
        %v471 = vunpack.c.l.b16 %v459
        %v472 = vpack.c.b16 %v469, %v468
        %v473 = vpack.c.b16 %v471, %v470
        %vm476 = vcmask 261120
        %v478 = vsel %vm476, %v454, 0
        %480 = vmatpush.bf16.msra.mxu0 0
        %481 = vmatpush.bf16.msra.mxu0 0
        %482 = vmatpush.bf16.msra.mxu0 0
        %483 = vmatpush.bf16.msra.mxu0 0
        %484 = vmatpush.bf16.msra.mxu0 0
        %485 = vmatpush.bf16.msra.mxu0 0
        %486 = vmatpush.bf16.msra.mxu0 %v473
        %487 = vmatpush.bf16.msra.mxu0 %v472
        %488 = vmatmul.bf16.gmra.mxu0 %v478
        %v489 = vpop.f32.mrf.mxu0
        %v490 = vadd.f32 %v462, %v489
        %v491 = vpop.f32.mrf.mxu0
        %492 = vdwg.mxu0
        %v493 = vpack.c.bf16 %v490, %v490
        %vm494 = vcmask 257024
        %495 = vst.msk [vmem:[#allocation2] sm:$0xf] %vm494, %v493
        %v496 = vld [vmem:[#allocation11] sm:$0xf]
        %v497 = vld [vmem:[#allocation11 + $0x4] sm:$0xf]
        %v498 = vld [vmem:[#allocation11 + $0x8] sm:$0xf]
        %v499 = vld [vmem:[#allocation11 + $0xc] sm:$0xf]
        %v500 = vld [vmem:[%s5] sm:$0x1]
        %v502 = vperm.slane %v500, 0
        %v508 = vunpack.c.l.b16 %v496
        %v509 = vunpack.c.l.b16 %v497
        %v510 = vunpack.c.l.b16 %v498
        %v511 = vunpack.c.l.b16 %v499
        %v512 = vpack.c.b16 %v509, %v508
        %v513 = vpack.c.b16 %v511, %v510
        %v517 = vsel %vm476, %v455, 0
        %519 = vmatpush.bf16.msra.mxu0 0
        %520 = vmatpush.bf16.msra.mxu0 0
        %521 = vmatpush.bf16.msra.mxu0 0
        %522 = vmatpush.bf16.msra.mxu0 0
        %523 = vmatpush.bf16.msra.mxu0 0
        %524 = vmatpush.bf16.msra.mxu0 0
        %525 = vmatpush.bf16.msra.mxu0 %v513
        %526 = vmatpush.bf16.msra.mxu0 %v512
        %527 = vmatmul.bf16.gmra.mxu0 %v517
        %v528 = vpop.f32.mrf.mxu0
        %v529 = vadd.f32 %v502, %v528
        %v530 = vpop.f32.mrf.mxu0
        %531 = vdwg.mxu0
        %v532 = vpack.c.bf16 %v529, %v529
        %533 = vst.msk [vmem:[#allocation3] sm:$0xf] %vm494, %v532
        %v534 = vld [vmem:[#allocation13] sm:$0xf]
        %v535 = vld [vmem:[#allocation13 + $0x4] sm:$0xf]
        %v536 = vld [vmem:[#allocation13 + $0x8] sm:$0xf]
        %v537 = vld [vmem:[#allocation13 + $0xc] sm:$0xf]
        %v538 = vld [vmem:[%s7] sm:$0x1]
        %v540 = vperm.slane %v538, 0
        %v546 = vunpack.c.l.b16 %v534
        %v547 = vunpack.c.l.b16 %v535
        %v548 = vunpack.c.l.b16 %v536
        %v549 = vunpack.c.l.b16 %v537
        %v550 = vpack.c.b16 %v547, %v546
        %v551 = vpack.c.b16 %v549, %v548
        %554 = vmatpush.bf16.msra.mxu0 0
        %555 = vmatpush.bf16.msra.mxu0 0
        %556 = vmatpush.bf16.msra.mxu0 0
        %557 = vmatpush.bf16.msra.mxu0 0
        %558 = vmatpush.bf16.msra.mxu0 0
        %559 = vmatpush.bf16.msra.mxu0 0
        %560 = vmatpush.bf16.msra.mxu0 %v551
        %561 = vmatpush.bf16.msra.mxu0 %v550
        %562 = vmatmul.bf16.gmra.mxu0 %v517
        %v563 = vpop.f32.mrf.mxu0
        %v564 = vadd.f32 %v540, %v563
        %v565 = vpop.f32.mrf.mxu0
        %566 = vdwg.mxu0
        %v567 = vpack.c.bf16 %v564, %v564
        %568 = vst.msk [vmem:[#allocation4] sm:$0xf] %vm494, %v567
        %v569 = vld [vmem:[#allocation2] sm:$0xf]
        %v570 = vld [vmem:[#allocation3] sm:$0xf]
        %v571 = vld [vmem:[#allocation4] sm:$0xf]
        %v572 = vld [vmem:[#allocation14] sm:$0xff]
        %v574 = vsel %vm476, %v569, 0
        %v577 = vsel %vm476, %v570, 0
        %579 = vmatpush.bf16.xpose.msra.mxu0 0
        %580 = vmatpush.bf16.xpose.msra.mxu0 0
        %581 = vmatpush.bf16.xpose.msra.mxu0 0
        %582 = vmatpush.bf16.xpose.msra.mxu0 0
        %583 = vmatpush.bf16.xpose.msra.mxu0 0
        %584 = vmatpush.bf16.xpose.msra.mxu0 0
        %585 = vmatpush.bf16.xpose.msra.mxu0 0
        %586 = vmatpush.bf16.xpose.msra.mxu0 %v577
        %587 = vmatmul.bf16.gmra.mxu0 %v574
        %v588 = vpop.f32.mrf.mxu0
        %v589 = vadd.f32 %v572, %v588
        %v590 = vpop.f32.mrf.mxu0
        %591 = vdwg.mxu0
        %vm592 = vcmask 64512
        %v593 = vsel %vm592, %v589, -inf
        %594 = vmax.xlane.f32.xlu0 %v593
        %v595 = vpop.xlane.xlu0 %594
        %v596 = vsub.f32 %v589, %v595
        %v597 = vmul.f32 %v596, 1.442695
        %v598 = vpow.pop %v597
        %v599 = vsel %vm592, %v598, 0.0
        %600 = vadd.xlane.f32.xlu0 %v599
        %v601 = vpop.xlane.xlu0 %600
        %v602 = vrcp.pop %v601
        %v603 = vmul.f32 %v598, %v602
        %v604 = vpack.c.bf16 %v603, %v603
        %v606 = vsel %vm592, %v604, 0
        %vm608 = vcmask 1043456
        %v610 = vsel %vm608, %v571, 0
        %612 = vmatpush.bf16.msra.mxu0 0
        %613 = vmatpush.bf16.msra.mxu0 0
        %614 = vmatpush.bf16.msra.mxu0 0
        %615 = vmatpush.bf16.msra.mxu0 0
        %616 = vmatpush.bf16.msra.mxu0 0
        %617 = vmatpush.bf16.msra.mxu0 0
        %618 = vmatpush.bf16.msra.mxu0 0
        %619 = vmatpush.bf16.msra.mxu0 %v610
        %620 = vmatmul.bf16.gmra.mxu0 %v606
        %v621 = vpop.f32.mrf.mxu0
        %v622 = vadd.f32 0.0, %v621
        %v623 = vpop.f32.mrf.mxu0
        %624 = vdwg.mxu0
        %625 = vst.msk [vmem:[%s452] sm:$0xff] %vm476, %v622
        %s626 = sand.u32 %s238, 1
        %s627 = scalar_lea.sflag [#allocation7], %s626
        %s628 = sand.u32 %s238, 1
        %s629 = smul.addr %s628, 8
        %s630 = scalar_lea.vmem [#allocation16], %s629
        // Predicated region
        $region81: #{tpu_custom_call.1} parent=55 // pred_check
          %p631 = pneg %p248
        $region82: #{tpu_custom_call.1} parent=55 // pred_check_branch
          %633 = sbr.rel (%p631) target = $region84
        $region83: #{tpu_custom_call.1} parent=55 // pred_region
          %635 = vsyncadd %s627, 0
          %s636 = smul.addr %s31, 8
          %s637 = scalar_lea.hbm %s9, %s636
          %s639 = sshll.u32 %s630, 4
          %s640 = int_to_ptr.vmem [resolvable:$true] %s639
          %s641 = sshll.u32 %s637, 4
          %s642 = int_to_ptr.hbm [resolvable:$true] %s641
          %644 = dma.vmem_to_hbm [thread:$0]  %s640, 128, %s642, %s627
        $region84: #{tpu_custom_call.1} parent=55 // pred_fallthru
          _
      $region56: #{tpu_custom_call.1} parent=5 // pred_fallthru
        _
      %p645 = scmp.le.s32.totalorder 2, %s26
      // Predicated region
      $region85: #{tpu_custom_call.1} parent=5 // pred_check
        %p646 = pneg %p645
      $region86: #{tpu_custom_call.1} parent=5 // pred_check_branch
        %648 = sbr.rel (%p646) target = $region88
      $region87: #{tpu_custom_call.1} parent=5 // pred_region
        %s649 = ssub.s32 %s26, 2
        // Predicated region
        $region89: #{tpu_custom_call.1} parent=87 // pred_check
          %p650 = pneg %p254
        $region90: #{tpu_custom_call.1} parent=87 // pred_check_branch
          %652 = sbr.rel (%p650) target = $region92
        $region91: #{tpu_custom_call.1} parent=87 // pred_region
          %s653 = sand.u32 %s239, 1
          %s654 = scalar_lea.sflag [#allocation7], %s653
          %s655 = sand.u32 %s239, 1
          %s656 = smul.addr %s655, 8
          %s657 = scalar_lea.vmem [#allocation16], %s656
          %659 = dma.done %s654, 128
        $region92: #{tpu_custom_call.1} parent=87 // pred_fallthru
          _
      $region88: #{tpu_custom_call.1} parent=5 // pred_fallthru
        _
    $region6: #{tpu_custom_call.1} parent=1 // loop_footer
      %s30 = sadd.s32 1, %s26
    $region7: #{tpu_custom_call.1} parent=1 // loop_footer_branch
      %25 = sbr.rel target = $region3
    $region8: #{tpu_custom_call.1} parent=1 // loop_exit
      _
    %660 = vsyncpa [#allocation6], 1
    %s661 = scalar_lea.sflag [#allocation6], 1
    %662 = vsyncpa %s661, 1
    %663 = vsyncpa [#allocation9], 1
    %s664 = scalar_lea.sflag [#allocation9], 1
    %665 = vsyncpa %s664, 1
    %666 = vsyncpa [#allocation12], 1
    %667 = vsyncpa [#allocation15], 1
    %668 = vsyncpa [#allocation7], 1
    %s669 = scalar_lea.sflag [#allocation7], 1
    %670 = vsyncpa %s669, 1

</llo_original>
